<compile_context>
chip_gen: v6e
topology: v6e:2x2x1
jax: 0.10.0
libtpu: 0.0.40
codegen_flags: <defaults>
</compile_context>

<pallas_src>
import math

import jax
import jax.numpy as jnp
from jax.experimental import pallas as pl
from jax.experimental.pallas import tpu as pltpu

_LANE = 128                              # lanes per vreg
_SUBLANE_WORDS = 8                       # 32-bit sublanes per vreg
_TARGET_BLOCK_BYTES = 4 * 1024 * 1024    # ~4 MiB x block per grid step


def make_sinusoidal_table(max_len, d_model, dtype=jnp.float32):
    """Exact JAX reproduction of the PyTorch buffer; shape (max_len, d_model)."""
    position = jnp.arange(max_len, dtype=jnp.float32)[:, None]
    div_term = jnp.exp(
        jnp.arange(0, d_model, 2, dtype=jnp.float32) * (-math.log(10000.0) / d_model)
    )
    angles = position * div_term                           # (max_len, ceil(D/2))
    pe = jnp.zeros((max_len, d_model), jnp.float32)
    pe = pe.at[:, 0::2].set(jnp.sin(angles))
    pe = pe.at[:, 1::2].set(jnp.cos(angles)[:, : d_model // 2])
    return pe.astype(dtype)


def _add_pe_kernel(x_ref, pe_ref, o_ref):
    # Pure memory-bound add.  pe block is (ts, 1, td) and broadcasts over the
    # batch/sublane axis on the VPU.  Add in f32, cast once on store.
    x = x_ref[...].astype(jnp.float32)
    pe = pe_ref[...].astype(jnp.float32)
    o_ref[...] = (x + pe).astype(o_ref.dtype)


def _packed_sublanes(itemsize):
    # 8 rows for 4-byte dtypes, 16 for 2-byte (bf16), 32 for 1-byte (int8/fp8).
    return _SUBLANE_WORDS * max(1, 4 // int(itemsize))


def _choose_tiles(seq_len, batch, d_model, itemsize):
    """Pick (seq_tile, d_tile) so each x block is ~_TARGET_BLOCK_BYTES."""
    pack = _packed_sublanes(itemsize)

    # ---- d_model (lane) tile: only needed when a minimal seq tile is already huge.
    td = d_model
    min_rows = min(pack, seq_len)
    if d_model % _LANE == 0 and min_rows * batch * d_model * itemsize > _TARGET_BLOCK_BYTES:
        td = max(_LANE,
                 (_TARGET_BLOCK_BYTES // (min_rows * batch * itemsize)) // _LANE * _LANE)
        td = min(td, d_model)
        while d_model % td != 0:          # prefer a divisor → no ragged last D block
            td -= _LANE

    # ---- sequence tile: fill the block budget.
    slab_bytes = max(1, batch * td * itemsize)
    ts = max(1, _TARGET_BLOCK_BYTES // slab_bytes)
    ts = min(ts, seq_len)
    if ts >= pack:
        ts = (ts // pack) * pack

    # Guarantee a multi-step grid when the sequence allows it (v7x has 2 TCs;
    # a grid of 1 leaves one idle).
    n_d = pl.cdiv(d_model, td)
    if n_d == 1 and ts >= seq_len and seq_len >= 2 * pack:
        ts = max(pack, ((seq_len // 2) // pack) * pack)

    # Prefer a seq tile that divides seq_len (no masked partial last block).
    if ts < seq_len and seq_len % ts != 0:
        step = pack if ts >= pack else 1
        lo = max(step, ts // 2)
        t = ts
        while t >= lo:
            if seq_len % t == 0:
                ts = t
                break
            t -= step

    return int(ts), int(td)


def _vmem_limit_bytes(per_step_bytes):
    """Scoped-VMEM budget: 2-deep pipeline of (x in + out + pe) plus headroom,
    clamped generation-aware (raise v5e's 16 MiB default, stay inside v7x's 64 MiB)."""
    need = 2 * int(per_step_bytes) + (8 << 20)
    hi = 48 << 20
    try:
        cap = int(pltpu.get_tpu_info().vmem_capacity_bytes)
        hi = min(hi, (3 * cap) // 4)
    except Exception:
        pass
    return int(min(hi, max(32 << 20, need)))


def positional_encoding_add(x, pe_table, *, seq_tile=None, d_tile=None, in_place=False):
    """out = x + pe_table[:S][:, None, :]  for x of shape (S, B, D).

    pe_table stays in its own (float32) dtype; the add is performed in f32 and
    the result cast to x.dtype.  If in_place=True the x HBM buffer is aliased
    to the output (saves an allocation only — do not reuse x afterwards).
    """
    assert x.ndim == 3, "x must be (seq_len, batch, d_model)"
    seq_len, batch, d_model = x.shape
    assert pe_table.shape[0] >= seq_len and pe_table.shape[-1] == d_model
    pe = pe_table[:seq_len].reshape(seq_len, 1, d_model)   # fp32 buffer, 1/B traffic

    itemsize = jnp.dtype(x.dtype).itemsize
    auto_ts, auto_td = _choose_tiles(seq_len, batch, d_model, itemsize)
    ts = int(seq_tile) if seq_tile is not None else auto_ts
    td = int(d_tile) if d_tile is not None else auto_td
    ts = max(1, min(ts, seq_len))
    td = max(1, min(td, d_model))
    assert td == d_model or td % _LANE == 0, \
        "d_tile must be a multiple of 128 lanes or the full d_model"

    grid = (pl.cdiv(seq_len, ts), pl.cdiv(d_model, td))
    x_block = (ts, batch, td)
    pe_block = (ts, 1, td)
    idx = lambda i, j: (i, 0, j)

    per_step_bytes = (2 * ts * batch * td * itemsize                    # x in + out
                      + ts * td * jnp.dtype(pe.dtype).itemsize)         # pe

    return pl.pallas_call(
        _add_pe_kernel,
        out_shape=jax.ShapeDtypeStruct(x.shape, x.dtype),
        grid_spec=pltpu.PrefetchScalarGridSpec(
            num_scalar_prefetch=0,
            grid=grid,
            in_specs=[pl.BlockSpec(x_block, idx),
                      pl.BlockSpec(pe_block, idx)],
            out_specs=pl.BlockSpec(x_block, idx),
        ),
        compiler_params=pltpu.CompilerParams(
            dimension_semantics=("parallel", "parallel"),
            vmem_limit_bytes=_vmem_limit_bytes(per_step_bytes),
        ),
        input_output_aliases={0: 0} if in_place else {},
    )(x, pe)


class PositionalEncoding:
    """JAX/Pallas equivalent of the PyTorch module (forward pass only)."""

    def __init__(self, d_model, max_len=5000):
        self.d_model = d_model
        self.max_len = max_len
        self.pe = make_sinusoidal_table(max_len, d_model)   # float32 "registered buffer"

    def __call__(self, x, *, seq_tile=None, d_tile=None, in_place=False):
        assert x.shape[0] <= self.max_len
        return positional_encoding_add(x, self.pe,
                                       seq_tile=seq_tile, d_tile=d_tile,
                                       in_place=in_place)


if __name__ == "__main__":
    tests = [
        # (S,  B, D,   dtype,        seq_tile, d_tile)
        (8,   2, 32,  jnp.float32,  None, None),   # module-implied toy shape (grid 1x1)
        (48,  2, 32,  jnp.float32,  None, None),   # auto multi-step seq grid (2x1)
        (32,  8, 128, jnp.bfloat16, None, None),   # bf16: pack-aware tile, split to 2 seq steps
        (16,  8, 256, jnp.float32,  8,    128),    # explicit 2-D (seq, d_model) grid (2x2)
    ]

    key = jax.random.PRNGKey(0)
    for (S, B, D, dtype, ts, td) in tests:
        key, sub = jax.random.split(key)
        x = jax.random.normal(sub, (S, B, D), dtype=jnp.float32).astype(dtype)

        module = PositionalEncoding(D, max_len=5000)
        # Reference: f32 add of the f32 buffer, cast back to x.dtype (kernel semantics).
        expected = (x.astype(jnp.float32) + module.pe[:S][:, None, :]).astype(dtype)

        out = module(x, seq_tile=ts, d_tile=td)
        out = jax.block_until_ready(out)

        assert out.shape == (S, B, D) and out.dtype == dtype
        tol = 1e-5 if dtype == jnp.float32 else 2e-2
        assert jnp.allclose(out.astype(jnp.float32), expected.astype(jnp.float32),
                            atol=tol, rtol=tol), f"mismatch for shape {(S, B, D)} {dtype}"

    print("KERNEL_OK")
</pallas_src>

<mosaic_0001>
module attributes {stable_mosaic.version = 11 : i64} {
  func.func @_add_pe_kernel(%arg0: i32, %arg1: i32, %arg2: memref<8x2x32xf32, #tpu.memory_space<vmem>>, %arg3: memref<8x1x32xf32, #tpu.memory_space<vmem>>, %arg4: memref<8x2x32xf32, #tpu.memory_space<vmem>>) attributes {dimension_semantics = [#tpu.dimension_semantics<parallel>, #tpu.dimension_semantics<parallel>], iteration_bounds = array<i64: 1, 1>, scalar_prefetch = 0 : i64, scratch_operands = 0 : i64, tpu.core_type = #tpu.core_type<tc>, window_params = [{transform_indices = @transform_0, window_bounds = array<i64: 8, 2, 32>}, {transform_indices = @transform_1, window_bounds = array<i64: 8, 1, 32>}, {transform_indices = @transform_2, window_bounds = array<i64: 8, 2, 32>}]} {
    %c0 = arith.constant 0 : index
    %c0_0 = arith.constant 0 : index
    %c0_1 = arith.constant 0 : index
    %0 = vector.load %arg2[%c0, %c0_0, %c0_1] : memref<8x2x32xf32, #tpu.memory_space<vmem>>, vector<8x2x32xf32>
    %c0_2 = arith.constant 0 : index
    %c0_3 = arith.constant 0 : index
    %c0_4 = arith.constant 0 : index
    %1 = vector.load %arg3[%c0_2, %c0_3, %c0_4] : memref<8x1x32xf32, #tpu.memory_space<vmem>>, vector<8x1x32xf32>
    %2 = vector.broadcast %1 : vector<8x1x32xf32> to vector<8x2x32xf32>
    %3 = arith.addf %0, %2 : vector<8x2x32xf32>
    %c0_5 = arith.constant 0 : index
    %c0_6 = arith.constant 0 : index
    %c0_7 = arith.constant 0 : index
    %4 = vector.load %arg4[%c0_5, %c0_6, %c0_7] : memref<8x2x32xf32, #tpu.memory_space<vmem>>, vector<8x2x32xf32>
    tpu.vector_store %arg4[%c0_5, %c0_6, %c0_7], %3 {strides = array<i32>} : memref<8x2x32xf32, #tpu.memory_space<vmem>>, vector<8x2x32xf32>,
    return
  }
  func.func @transform_0(%arg0: i32, %arg1: i32) -> (i32, i32, i32) {
    %c0_i32 = arith.constant 0 : i32
    %c0_i32_0 = arith.constant 0 : i32
    return %arg0, %c0_i32, %arg1 : i32, i32, i32
  }
  func.func @transform_1(%arg0: i32, %arg1: i32) -> (i32, i32, i32) {
    %c0_i32 = arith.constant 0 : i32
    %c0_i32_0 = arith.constant 0 : i32
    return %arg0, %c0_i32, %arg1 : i32, i32, i32
  }
  func.func @transform_2(%arg0: i32, %arg1: i32) -> (i32, i32, i32) {
    %c0_i32 = arith.constant 0 : i32
    %c0_i32_0 = arith.constant 0 : i32
    return %arg0, %c0_i32, %arg1 : i32, i32, i32
  }
}

</mosaic_0001>

<llo_original>
// kernel: tpu_custom_call.1
$region0: #{tpu_custom_call.1}
  #allocation0 [shape = 'u32[]', space=smem, size = 0x4, offset = 0x4, fixed_abs, tag = 'smem constant byte address 0x4 - core index']
  #allocation1 [shape = 'u32[144,128]{1,0:T(1,128)}', space=vmem, size = 0x12000, scoped, tag = 'internal scratch']
  %s0 = inlined_call_operand.hbm [shape: f32[8,2,32], index: 0, kind: input, shape index: {}]
  %s1 = inlined_call_operand.hbm [shape: f32[8,1,32], index: 1, kind: input, shape index: {}]
  %s2 = inlined_call_operand.hbm [shape: f32[8,2,32], index: 2, kind: output, shape index: {}]
  %s3 = sld [smem:[#allocation0]]
  $region26: #{tpu_custom_call.1} parent=0
    _
  %s5 = ssub.s32 1, %s3
  %s6 = scalar_select 0, %s5, %s3
  $region1: #{tpu_custom_call.1} parent=0
    #allocation2 [shape = 'u8[8192]{0}', space=vmem, size = 0x2000, scoped, tag = 'input window, operand 0, single buffered']
    #allocation3 [shape = 's32[1]{0}', space=sflag, size = 0x4, scoped, tag = 'scoped memory for tpu_custom_call.1']
    #allocation4 [shape = 's32[1]{0}', space=sflag, size = 0x4, scoped, tag = 'scoped memory for tpu_custom_call.1']
    #allocation5 [shape = 'u8[4096]{0}', space=vmem, size = 0x1000, scoped, tag = 'input window, operand 1, single buffered']
    #allocation6 [shape = 's32[1]{0}', space=sflag, size = 0x4, scoped, tag = 'scoped memory for tpu_custom_call.1']
    #allocation7 [shape = 'u8[8192]{0}', space=vmem, size = 0x2000, scoped, tag = 'output window, operand 0, single buffered']
    %7 = vsyncpa [#allocation3], 0
    %8 = vsyncpa [#allocation6], 0
    %9 = vsyncpa [#allocation4], 0
    // Predicated region
    $region2: #{tpu_custom_call.1} parent=1 // pred_check
      _
    $region3: #{tpu_custom_call.1} parent=1 // pred_check_branch
      %11 = sbr.rel (0) target = $region5
    $region4: #{tpu_custom_call.1} parent=1 // pred_region
      %s13 = ssub.s32 256, 256
      %14 = vsyncadd [#allocation3], %s13
      %s15 = sshll.u32 [#allocation2], 4
      %s16 = int_to_ptr.vmem [resolvable:$true] %s15
      %21 = dma.hbm_to_vmem [thread:$0]  %s0, 256, %s16, [#allocation3], 32, 32, 2
    $region5: #{tpu_custom_call.1} parent=1 // pred_fallthru
      _
    // Predicated region
    $region6: #{tpu_custom_call.1} parent=1 // pred_check
      _
    $region7: #{tpu_custom_call.1} parent=1 // pred_check_branch
      %23 = sbr.rel (0) target = $region9
    $region8: #{tpu_custom_call.1} parent=1 // pred_region
      %s25 = ssub.s32 128, 128
      %26 = vsyncadd [#allocation6], %s25
      %s27 = sshll.u32 [#allocation5], 4
      %s28 = int_to_ptr.vmem [resolvable:$true] %s27
      %33 = dma.hbm_to_vmem [thread:$0]  %s1, 128, %s28, [#allocation6], 16, 16, 1
    $region9: #{tpu_custom_call.1} parent=1 // pred_fallthru
      _
    // Predicated region
    $region10: #{tpu_custom_call.1} parent=1 // pred_check
      _
    $region11: #{tpu_custom_call.1} parent=1 // pred_check_branch
      %35 = sbr.rel (0) target = $region13
    $region12: #{tpu_custom_call.1} parent=1 // pred_region
      %36 = dma.done [#allocation3], 256
    $region13: #{tpu_custom_call.1} parent=1 // pred_fallthru
      _
    // Predicated region
    $region14: #{tpu_custom_call.1} parent=1 // pred_check
      _
    $region15: #{tpu_custom_call.1} parent=1 // pred_check_branch
      %38 = sbr.rel (0) target = $region17
    $region16: #{tpu_custom_call.1} parent=1 // pred_region
      %39 = dma.done [#allocation6], 128
    $region17: #{tpu_custom_call.1} parent=1 // pred_fallthru
      _
    %v40 = vld [vmem:[#allocation2] sm:$0x3]
    %v41 = vld [vmem:[#allocation2 + $0x2] sm:$0x3]
    %v42 = vld [vmem:[#allocation2 + $0x4] sm:$0x3]
    %v43 = vld [vmem:[#allocation2 + $0x6] sm:$0x3]
    %v44 = vld [vmem:[#allocation2 + $0x8] sm:$0x3]
    %v45 = vld [vmem:[#allocation2 + $0xa] sm:$0x3]
    %v46 = vld [vmem:[#allocation2 + $0xc] sm:$0x3]
    %v47 = vld [vmem:[#allocation2 + $0xe] sm:$0x3]
    %v48 = vld [vmem:[#allocation5] sm:$0x1]
    %v49 = vld [vmem:[#allocation5 + $0x1] sm:$0x1]
    %v50 = vld [vmem:[#allocation5 + $0x2] sm:$0x1]
    %v51 = vld [vmem:[#allocation5 + $0x3] sm:$0x1]
    %v52 = vld [vmem:[#allocation5 + $0x4] sm:$0x1]
    %v53 = vld [vmem:[#allocation5 + $0x5] sm:$0x1]
    %v54 = vld [vmem:[#allocation5 + $0x6] sm:$0x1]
    %v55 = vld [vmem:[#allocation5 + $0x7] sm:$0x1]
    %v64 = vlaneseq
    %v65 = vshrl.u32 %v64, 7
    %v66 = vsub.s32 0, %v65
    %v67 = vrot.slane %v48, %v66
    %v68 = vlaneseq
    %v69 = vshrl.u32 %v68, 7
    %v70 = vsub.s32 0, %v69
    %v71 = vrot.slane %v49, %v70
    %v72 = vlaneseq
    %v73 = vshrl.u32 %v72, 7
    %v74 = vsub.s32 0, %v73
    %v75 = vrot.slane %v50, %v74
    %v76 = vlaneseq
    %v77 = vshrl.u32 %v76, 7
    %v78 = vsub.s32 0, %v77
    %v79 = vrot.slane %v51, %v78
    %v80 = vlaneseq
    %v81 = vshrl.u32 %v80, 7
    %v82 = vsub.s32 0, %v81
    %v83 = vrot.slane %v52, %v82
    %v84 = vlaneseq
    %v85 = vshrl.u32 %v84, 7
    %v86 = vsub.s32 0, %v85
    %v87 = vrot.slane %v53, %v86
    %v88 = vlaneseq
    %v89 = vshrl.u32 %v88, 7
    %v90 = vsub.s32 0, %v89
    %v91 = vrot.slane %v54, %v90
    %v92 = vlaneseq
    %v93 = vshrl.u32 %v92, 7
    %v94 = vsub.s32 0, %v93
    %v95 = vrot.slane %v55, %v94
    %v104 = vadd.f32 %v40, %v67
    %v105 = vadd.f32 %v41, %v71
    %v106 = vadd.f32 %v42, %v75
    %v107 = vadd.f32 %v43, %v79
    %v108 = vadd.f32 %v44, %v83
    %v109 = vadd.f32 %v45, %v87
    %v110 = vadd.f32 %v46, %v91
    %v111 = vadd.f32 %v47, %v95
    %vm112 = vcmask 254976
    %113 = vst.msk [vmem:[#allocation7] sm:$0x3] %vm112, %v104
    %114 = vst.msk [vmem:[#allocation7 + $0x2] sm:$0x3] %vm112, %v105
    %115 = vst.msk [vmem:[#allocation7 + $0x4] sm:$0x3] %vm112, %v106
    %116 = vst.msk [vmem:[#allocation7 + $0x6] sm:$0x3] %vm112, %v107
    %117 = vst.msk [vmem:[#allocation7 + $0x8] sm:$0x3] %vm112, %v108
    %118 = vst.msk [vmem:[#allocation7 + $0xa] sm:$0x3] %vm112, %v109
    %119 = vst.msk [vmem:[#allocation7 + $0xc] sm:$0x3] %vm112, %v110
    %120 = vst.msk [vmem:[#allocation7 + $0xe] sm:$0x3] %vm112, %v111
    // Predicated region
    $region18: #{tpu_custom_call.1} parent=1 // pred_check
      _
    $region19: #{tpu_custom_call.1} parent=1 // pred_check_branch
      %122 = sbr.rel (0) target = $region21
    $region20: #{tpu_custom_call.1} parent=1 // pred_region
      %s124 = ssub.s32 256, 256
      %125 = vsyncadd [#allocation4], %s124
      %s126 = sshll.u32 [#allocation7], 4
      %s127 = int_to_ptr.vmem [resolvable:$true] %s126
      %132 = dma.vmem_to_hbm [thread:$0]  %s127, 256, %s2, [#allocation4], 32, 32, 2
    $region21: #{tpu_custom_call.1} parent=1 // pred_fallthru
      _
    // Predicated region
    $region22: #{tpu_custom_call.1} parent=1 // pred_check
      _
    $region23: #{tpu_custom_call.1} parent=1 // pred_check_branch
      %134 = sbr.rel (0) target = $region25
    $region24: #{tpu_custom_call.1} parent=1 // pred_region
      %135 = dma.done [#allocation4], 256
    $region25: #{tpu_custom_call.1} parent=1 // pred_fallthru
      _
    %136 = vsyncpa [#allocation3], 1
    %137 = vsyncpa [#allocation6], 1
    %138 = vsyncpa [#allocation4], 1

</llo_original>
